<compile_context>
chip_gen: v7x
topology: tpu7x:2x2x1
jax: 0.10.0
libtpu: 0.0.40
codegen_flags: <defaults>
</compile_context>

<pallas_src>
import functools

import jax
import jax.numpy as jnp
from jax.experimental import pallas as pl
from jax.experimental.pallas import tpu as pltpu

_LANES = 128
_SUBLANES = 8
# ~4 MiB per (widest-dtype) input block — amortizes the ~0.35 us grid-step
# overhead to <10% of the per-step DMA time on every generation.
_TARGET_BLOCK_BYTES = 4 * 1024 * 1024
# 2 inputs x 2 buffers x 4 MiB ~= 16 MiB working set; raise the scoped-VMEM
# limit well above that but stay under physical VMEM on all chips (v7x: 64 MiB).
_VMEM_LIMIT_BYTES = 40 * 1024 * 1024


def _l1_log_kernel(fake_ref, real_ref, out_ref, *, rows, row_tile,
                   blocks_per_split, full_blocks, has_partial, need_guard):
    c = pl.program_id(0)   # core split (CORE_PARALLEL on v7x, size 1 elsewhere)
    i = pl.program_id(1)   # reduction step within the split ("arbitrary")

    # out_ref's block index is constant along axis 1, so it is resident in VMEM
    # for the whole reduction: accumulate into it directly (no scratch buffer).
    @pl.when(i == 0)
    def _():
        out_ref[...] = jnp.zeros_like(out_ref)

    def _accumulate(masked):
        f = fake_ref[...].astype(jnp.float32)
        r = real_ref[...].astype(jnp.float32)
        diff = jnp.abs(jnp.log(r) - jnp.log(f))
        if masked:
            # NOTE: this must stay a select (jnp.where), NOT a multiply-by-mask:
            # rows past `rows` hold log() of padded/uninitialized data (NaN/Inf)
            # and a multiply would propagate them into the sum.
            blk = c * blocks_per_split + i
            row_ids = blk * row_tile + jax.lax.broadcasted_iota(
                jnp.int32, (row_tile, _LANES), 0)
            diff = jnp.where(row_ids < rows, diff, 0.0)
        # (row_tile,128) -> (row_tile//8, 8, 128) aligns exactly to (8,128)
        # vreg tiles: a no-copy re-tiling followed by a chain of VPU vreg adds.
        out_ref[0] += diff.reshape(
            row_tile // _SUBLANES, _SUBLANES, _LANES).sum(axis=0)

    if not need_guard:
        # Common case: every block is full and every step maps to a real block.
        _accumulate(False)
    else:
        blk = c * blocks_per_split + i

        # Interior blocks: unmasked hot path (no per-element iota/cmp/select).
        @pl.when(blk < full_blocks)
        def _():
            _accumulate(False)

        if has_partial:
            # Only the single boundary block pays for the mask.
            @pl.when(blk == full_blocks)
            def _():
                _accumulate(True)
        # blk beyond the last real block: duplicate DMA of a clamped block
        # (overhang from the core split) — contributes nothing, skip entirely.


def _native_flat(x):
    """Flatten; keep 16/32-bit float dtypes native so DMA runs at native width."""
    if jnp.issubdtype(x.dtype, jnp.floating) and x.dtype.itemsize in (2, 4):
        return x.reshape(-1)
    return x.reshape(-1).astype(jnp.float32)


def _default_num_splits():
    # Only v7x has 2 TensorCores; on v5e/v6e a split axis just adds grid steps,
    # forces masking, and DMAs one duplicate block.
    try:
        kind = jax.devices()[0].device_kind.lower()
    except Exception:
        return 1
    return 2 if "v7" in kind else 1


def l1_log_loss(fake, real, *, row_tile=None, num_splits=None):
    """mean(|log(real) - log(fake)|) via a Pallas TPU streaming-reduction kernel.

    Inputs must be strictly positive (same contract as the PyTorch module:
    zero/negative inputs produce -inf/NaN, no guards are added).
    """
    assert fake.shape == real.shape
    total_n = fake.size

    flat_f = _native_flat(fake)
    flat_r = _native_flat(real)

    # Sublane packing granularity: 16 rows for 16-bit dtypes, 8 for 32-bit.
    sub = 16 if min(flat_f.dtype.itemsize, flat_r.dtype.itemsize) == 2 else _SUBLANES

    # The kernel consumes a multiple of (sub*128) elements (zero-copy reshape
    # into the lane-dense slab); the tiny remainder is summed in plain JAX —
    # no padded copy of the whole tensor.
    chunk = sub * _LANES
    main = (total_n // chunk) * chunk

    tail_sum = jnp.float32(0.0)
    if main < total_n:
        tf = flat_f[main:].astype(jnp.float32)
        tr = flat_r[main:].astype(jnp.float32)
        tail_sum = jnp.sum(jnp.abs(jnp.log(tr) - jnp.log(tf)))

    if main == 0:
        return tail_sum / total_n

    rows = main // _LANES                      # multiple of `sub`
    f2d = flat_f[:main].reshape(rows, _LANES)
    r2d = flat_r[:main].reshape(rows, _LANES)

    # ~4 MiB per widest-dtype input block (8192 rows f32, 16384 rows bf16/f16),
    # capped at the array so blocks never exceed it.
    if row_tile is None:
        widest = max(flat_f.dtype.itemsize, flat_r.dtype.itemsize)
        row_tile = _TARGET_BLOCK_BYTES // (_LANES * widest)
    row_tile = max(sub, min(row_tile, rows))
    row_tile = (row_tile // sub) * sub

    if num_splits is None:
        num_splits = _default_num_splits()
    num_splits = max(1, int(num_splits))

    full_blocks = rows // row_tile
    has_partial = (rows % row_tile) != 0
    n_blocks = full_blocks + int(has_partial)
    blocks_per_split = pl.cdiv(n_blocks, num_splits)
    overhang = num_splits * blocks_per_split - n_blocks
    need_guard = has_partial or overhang > 0

    def in_map(c, i):
        # Clamp so duplicate / overhanging step ids never DMA out of bounds;
        # their contribution is skipped / masked inside the kernel.
        return (jnp.minimum(c * blocks_per_split + i, n_blocks - 1), 0)

    kernel = functools.partial(
        _l1_log_kernel,
        rows=rows, row_tile=row_tile, blocks_per_split=blocks_per_split,
        full_blocks=full_blocks, has_partial=has_partial, need_guard=need_guard)

    bytes_accessed = (main * (flat_f.dtype.itemsize + flat_r.dtype.itemsize)
                      + num_splits * _SUBLANES * _LANES * 4)
    cost = pl.CostEstimate(flops=4 * main, transcendentals=2 * main,
                           bytes_accessed=bytes_accessed)

    grid_spec = pltpu.PrefetchScalarGridSpec(
        num_scalar_prefetch=0,
        grid=(num_splits, blocks_per_split),
        in_specs=[
            pl.BlockSpec((row_tile, _LANES), in_map),
            pl.BlockSpec((row_tile, _LANES), in_map),
        ],
        out_specs=pl.BlockSpec((1, _SUBLANES, _LANES), lambda c, i: (c, 0, 0)),
    )

    def run(axis0_sem):
        return pl.pallas_call(
            kernel,
            out_shape=jax.ShapeDtypeStruct(
                (num_splits, _SUBLANES, _LANES), jnp.float32),
            grid_spec=grid_spec,
            compiler_params=pltpu.CompilerParams(
                dimension_semantics=(axis0_sem, "arbitrary"),
                vmem_limit_bytes=_VMEM_LIMIT_BYTES,
            ),
            cost_estimate=cost,
        )(f2d, r2d)

    if num_splits > 1:
        # CORE_PARALLEL actually shards the split axis across v7x's two
        # TensorCores (plain "parallel" does not change codegen).  Fall back
        # to a sequential split if this chip/runtime rejects it.
        try:
            partials = jax.block_until_ready(run(pltpu.CORE_PARALLEL))
        except Exception:
            partials = run("arbitrary")
    else:
        partials = run("arbitrary")

    return (jnp.sum(partials) + tail_sum) / total_n


if __name__ == "__main__":
    key = jax.random.PRNGKey(0)
    kf, kr = jax.random.split(key)

    # strictly positive inputs (log requires > 0), NCHW shape
    fake = jax.random.uniform(kf, (2, 4, 16, 16), jnp.float32, minval=0.1, maxval=2.0)
    real = jax.random.uniform(kr, (2, 4, 16, 16), jnp.float32, minval=0.1, maxval=2.0)

    loss = l1_log_loss(fake, real)
    jax.block_until_ready(loss)
    ref = jnp.mean(jnp.abs(jnp.log(real) - jnp.log(fake)))
    assert jnp.allclose(loss, ref, rtol=1e-5, atol=1e-6), (loss, ref)

    # odd-sized input: exercises the boundary mask + wrapper remainder path
    kf2, kr2 = jax.random.split(kr)
    fake2 = jax.random.uniform(kf2, (3, 4, 17, 19), jnp.float32, minval=0.1, maxval=2.0)
    real2 = jax.random.uniform(kr2, (3, 4, 17, 19), jnp.float32, minval=0.1, maxval=2.0)
    loss2 = l1_log_loss(fake2, real2)
    jax.block_until_ready(loss2)
    ref2 = jnp.mean(jnp.abs(jnp.log(real2) - jnp.log(fake2)))
    assert jnp.allclose(loss2, ref2, rtol=1e-5, atol=1e-6), (loss2, ref2)

    # bf16 inputs: DMA'd at native width, upcast to f32 inside the kernel
    kf3, kr3 = jax.random.split(kr2)
    fake3 = jax.random.uniform(kf3, (2, 4, 16, 16), jnp.float32,
                               minval=0.1, maxval=2.0).astype(jnp.bfloat16)
    real3 = jax.random.uniform(kr3, (2, 4, 16, 16), jnp.float32,
                               minval=0.1, maxval=2.0).astype(jnp.bfloat16)
    loss3 = l1_log_loss(fake3, real3)
    jax.block_until_ready(loss3)
    ref3 = jnp.mean(jnp.abs(jnp.log(real3.astype(jnp.float32))
                            - jnp.log(fake3.astype(jnp.float32))))
    assert jnp.allclose(loss3, ref3, rtol=1e-3, atol=1e-5), (loss3, ref3)

    print("KERNEL_OK")
</pallas_src>

<mosaic_0001>
module attributes {stable_mosaic.version = 11 : i64} {
  func.func @_l1_log_kernel(%arg0: i32, %arg1: i32, %arg2: memref<16x128xf32, #tpu.memory_space<vmem>>, %arg3: memref<16x128xf32, #tpu.memory_space<vmem>>, %arg4: memref<1x8x128xf32, #tpu.memory_space<vmem>>) attributes {dimension_semantics = [#tpu.dimension_semantics<arbitrary>, #tpu.dimension_semantics<arbitrary>], iteration_bounds = array<i64: 1, 1>, scalar_prefetch = 0 : i64, scratch_operands = 0 : i64, tpu.core_type = #tpu.core_type<tc>, window_params = [{transform_indices = @transform_0, window_bounds = array<i64: 16, 128>}, {transform_indices = @transform_1, window_bounds = array<i64: 16, 128>}, {transform_indices = @transform_2, window_bounds = array<i64: 1, 8, 128>}]} {
    %c0_i32 = arith.constant 0 : i32
    %0 = arith.cmpi eq, %arg1, %c0_i32 : i32
    %1 = arith.extui %0 : i1 to i32
    %c0_i32_0 = arith.constant 0 : i32
    %2 = arith.cmpi ne, %1, %c0_i32_0 : i32
    scf.if %2 {
      %cst_10 = arith.constant 0.000000e+00 : f32
      %17 = vector.broadcast %cst_10 : f32 to vector<1x8x128xf32>
      %c0_11 = arith.constant 0 : index
      %c0_12 = arith.constant 0 : index
      %c0_13 = arith.constant 0 : index
      %18 = vector.load %arg4[%c0_11, %c0_12, %c0_13] : memref<1x8x128xf32, #tpu.memory_space<vmem>>, vector<1x8x128xf32>
      tpu.vector_store %arg4[%c0_11, %c0_12, %c0_13], %17 {strides = array<i32>} : memref<1x8x128xf32, #tpu.memory_space<vmem>>, vector<1x8x128xf32>,
    } else {
    }
    %c0 = arith.constant 0 : index
    %c0_1 = arith.constant 0 : index
    %3 = vector.load %arg2[%c0, %c0_1] : memref<16x128xf32, #tpu.memory_space<vmem>>, vector<16x128xf32>
    %c0_2 = arith.constant 0 : index
    %c0_3 = arith.constant 0 : index
    %4 = vector.load %arg3[%c0_2, %c0_3] : memref<16x128xf32, #tpu.memory_space<vmem>>, vector<16x128xf32>
    %5 = math.log %4 : vector<16x128xf32>
    %6 = math.log %3 : vector<16x128xf32>
    %7 = arith.subf %5, %6 : vector<16x128xf32>
    %8 = math.absf %7 : vector<16x128xf32>
    %c0_4 = arith.constant 0 : index
    %c0_5 = arith.constant 0 : index
    %c0_6 = arith.constant 0 : index
    %9 = vector.load %arg4[%c0_4, %c0_5, %c0_6] : memref<1x8x128xf32, #tpu.memory_space<vmem>>, vector<1x8x128xf32>
    %10 = vector.shape_cast %9 : vector<1x8x128xf32> to vector<8x128xf32>
    %11 = vector.shape_cast %8 : vector<16x128xf32> to vector<2x8x128xf32>
    %cst = arith.constant dense<0.000000e+00> : vector<8x128xf32>
    %12 = vector.multi_reduction <add>, %11, %cst [0] : vector<2x8x128xf32> to vector<8x128xf32>
    %13 = arith.addf %10, %12 : vector<8x128xf32>
    %c0_7 = arith.constant 0 : index
    %c0_8 = arith.constant 0 : index
    %c0_9 = arith.constant 0 : index
    %14 = vector.load %arg4[%c0_7, %c0_8, %c0_9] : memref<1x8x128xf32, #tpu.memory_space<vmem>>, vector<1x8x128xf32>
    %15 = vector.shape_cast %14 : vector<1x8x128xf32> to vector<8x128xf32>
    %16 = vector.shape_cast %13 : vector<8x128xf32> to vector<1x8x128xf32>
    tpu.vector_store %arg4[%c0_7, %c0_8, %c0_9], %16 {strides = array<i32>} : memref<1x8x128xf32, #tpu.memory_space<vmem>>, vector<1x8x128xf32>,
    return
  }
  func.func @transform_0(%arg0: i32, %arg1: i32) -> (i32, i32) {
    %c1_i32 = arith.constant 1 : i32
    %0 = arith.muli %arg0, %c1_i32 : i32
    %1 = arith.addi %0, %arg1 : i32
    %c0_i32 = arith.constant 0 : i32
    %2 = arith.minsi %1, %c0_i32 : i32
    %c0_i32_0 = arith.constant 0 : i32
    %c0_i32_1 = arith.constant 0 : i32
    return %2, %c0_i32_0 : i32, i32
  }
  func.func @transform_1(%arg0: i32, %arg1: i32) -> (i32, i32) {
    %c1_i32 = arith.constant 1 : i32
    %0 = arith.muli %arg0, %c1_i32 : i32
    %1 = arith.addi %0, %arg1 : i32
    %c0_i32 = arith.constant 0 : i32
    %2 = arith.minsi %1, %c0_i32 : i32
    %c0_i32_0 = arith.constant 0 : i32
    %c0_i32_1 = arith.constant 0 : i32
    return %2, %c0_i32_0 : i32, i32
  }
  func.func @transform_2(%arg0: i32, %arg1: i32) -> (i32, i32, i32) {
    %c0_i32 = arith.constant 0 : i32
    %c0_i32_0 = arith.constant 0 : i32
    %c0_i32_1 = arith.constant 0 : i32
    return %arg0, %c0_i32, %c0_i32_0 : i32, i32, i32
  }
}

</mosaic_0001>

<llo_original>
// kernel: tpu_custom_call.1
$region0: #{tpu_custom_call.1}
  #allocation0 [shape = 'u32[]', space=smem, size = 0x4, offset = 0x4, fixed_abs, tag = 'smem constant byte address 0x4 - core index']
  #allocation1 [shape = 'u32[144,128]{1,0:T(1,128)}', space=vmem, size = 0x12000, scoped, tag = 'internal scratch']
  %s0 = inlined_call_operand.hbm [shape: f32[16,128], index: 0, kind: input, shape index: {}]
  %s1 = inlined_call_operand.hbm [shape: f32[16,128], index: 1, kind: input, shape index: {}]
  %s2 = inlined_call_operand.hbm [shape: f32[1,8,128], index: 2, kind: output, shape index: {}]
  %s3 = sld [smem:[#allocation0]]
  $region30: #{tpu_custom_call.1} parent=0
    _
  %s5 = ssub.s32 1, %s3
  %s6 = scalar_select 0, %s5, %s3
  $region1: #{tpu_custom_call.1} parent=0
    #allocation2 [shape = 'u8[8192]{0}', space=vmem, size = 0x2000, scoped, tag = 'input window, operand 0, single buffered']
    #allocation3 [shape = 's32[1]{0}', space=sflag, size = 0x4, scoped, tag = 'scoped memory for tpu_custom_call.1']
    #allocation4 [shape = 's32[1]{0}', space=sflag, size = 0x4, scoped, tag = 'scoped memory for tpu_custom_call.1']
    #allocation5 [shape = 'u8[8192]{0}', space=vmem, size = 0x2000, scoped, tag = 'input window, operand 1, single buffered']
    #allocation6 [shape = 's32[1]{0}', space=sflag, size = 0x4, scoped, tag = 'scoped memory for tpu_custom_call.1']
    #allocation7 [shape = 'u8[4096]{0}', space=vmem, size = 0x1000, scoped, tag = 'output window, operand 0, single buffered']
    %7 = vsyncpa [#allocation3], 0
    %8 = vsyncpa [#allocation6], 0
    %9 = vsyncpa [#allocation4], 0
    // Predicated region
    $region2: #{tpu_custom_call.1} parent=1 // pred_check
      _
    $region3: #{tpu_custom_call.1} parent=1 // pred_check_branch
      %11 = sbr.rel (0) target = $region5
    $region4: #{tpu_custom_call.1} parent=1 // pred_region
      %s12 = sadd.s32 0, 0
      %p13 = scmp.lt.s32.totalorder %s12, 0
      %s14 = scalar_select %p13, %s12, 0
      %s15 = smul.u32 2, %s14
      %s17 = ssub.s32 256, 256
      %18 = vsyncadd [#allocation3], %s17
      %s19 = smul.addr %s15, 128
      %s20 = scalar_lea.hbm %s0, %s19
      %s21 = sshll.u32 [#allocation2], 4
      %s22 = int_to_ptr.vmem [resolvable:$true] %s21
      %27 = dma.hbm_to_vmem [thread:$0]  %s20, 256, %s22, [#allocation3], 128, 128, 8
    $region5: #{tpu_custom_call.1} parent=1 // pred_fallthru
      _
    // Predicated region
    $region6: #{tpu_custom_call.1} parent=1 // pred_check
      _
    $region7: #{tpu_custom_call.1} parent=1 // pred_check_branch
      %29 = sbr.rel (0) target = $region9
    $region8: #{tpu_custom_call.1} parent=1 // pred_region
      %s30 = sadd.s32 0, 0
      %p31 = scmp.lt.s32.totalorder %s30, 0
      %s32 = scalar_select %p31, %s30, 0
      %s33 = smul.u32 2, %s32
      %s35 = ssub.s32 256, 256
      %36 = vsyncadd [#allocation6], %s35
      %s37 = smul.addr %s33, 128
      %s38 = scalar_lea.hbm %s1, %s37
      %s39 = sshll.u32 [#allocation5], 4
      %s40 = int_to_ptr.vmem [resolvable:$true] %s39
      %45 = dma.hbm_to_vmem [thread:$0]  %s38, 256, %s40, [#allocation6], 128, 128, 8
    $region9: #{tpu_custom_call.1} parent=1 // pred_fallthru
      _
    // Predicated region
    $region10: #{tpu_custom_call.1} parent=1 // pred_check
      _
    $region11: #{tpu_custom_call.1} parent=1 // pred_check_branch
      %47 = sbr.rel (0) target = $region13
    $region12: #{tpu_custom_call.1} parent=1 // pred_region
      %48 = dma.done [#allocation3], 256
    $region13: #{tpu_custom_call.1} parent=1 // pred_fallthru
      _
    // Predicated region
    $region14: #{tpu_custom_call.1} parent=1 // pred_check
      _
    $region15: #{tpu_custom_call.1} parent=1 // pred_check_branch
      %50 = sbr.rel (0) target = $region17
    $region16: #{tpu_custom_call.1} parent=1 // pred_region
      %51 = dma.done [#allocation6], 256
    $region17: #{tpu_custom_call.1} parent=1 // pred_fallthru
      _
    %s52 = sadd.s32 0, 0
    %p53 = scmp.lt.s32.totalorder %s52, 0
    %s54 = scalar_select %p53, %s52, 0
    %s55 = smul.u32 2, %s54
    %s56 = sadd.s32 0, 0
    %p57 = scmp.lt.s32.totalorder %s56, 0
    %s58 = scalar_select %p57, %s56, 0
    %s59 = smul.u32 2, %s58
    %p60 = scmp.eq.s32.totalorder 0, 0
    // Predicated region
    $region18: #{tpu_custom_call.1} parent=1 // pred_check
      %p61 = pneg %p60
    $region19: #{tpu_custom_call.1} parent=1 // pred_check_branch
      %63 = sbr.rel (%p61) target = $region21
    $region20: #{tpu_custom_call.1} parent=1 // pred_region
      %64 = vst [vmem:[#allocation7] sm:$0xff] 0.0
    $region21: #{tpu_custom_call.1} parent=1 // pred_fallthru
      _
    %v65 = vld [vmem:[#allocation2] sm:$0xff]
    %v66 = vld [vmem:[#allocation2 + $0x8] sm:$0xff]
    %v67 = vld [vmem:[#allocation5] sm:$0xff]
    %v68 = vld [vmem:[#allocation5 + $0x8] sm:$0xff]
    %v69 = vlog2.pop %v67
    %v70 = vmul.f32 %v69, 0.6931472
    %v71 = vlog2.pop %v68
    %v72 = vmul.f32 %v71, 0.6931472
    %v73 = vlog2.pop %v65
    %v74 = vmul.f32 %v73, 0.6931472
    %v75 = vlog2.pop %v66
    %v76 = vmul.f32 %v75, 0.6931472
    %v77 = vsub.f32 %v70, %v74
    %v78 = vsub.f32 %v72, %v76
    %v79 = vand.u32 2147483647, %v77
    %v80 = vand.u32 2147483647, %v78
    %v81 = vld [vmem:[#allocation7] sm:$0xff]
    %v82 = vadd.f32 %v79, %v80
    %v83 = vadd.f32 %v81, %v82
    %84 = vst [vmem:[#allocation7] sm:$0xff] %v83
    // Predicated region
    $region22: #{tpu_custom_call.1} parent=1 // pred_check
      _
    $region23: #{tpu_custom_call.1} parent=1 // pred_check_branch
      %86 = sbr.rel (0) target = $region25
    $region24: #{tpu_custom_call.1} parent=1 // pred_region
      %s88 = ssub.s32 128, 128
      %89 = vsyncadd [#allocation4], %s88
      %s91 = sshll.u32 [#allocation7], 4
      %s92 = int_to_ptr.vmem [resolvable:$true] %s91
      %94 = dma.vmem_to_hbm [thread:$0]  %s92, 128, %s2, [#allocation4]
    $region25: #{tpu_custom_call.1} parent=1 // pred_fallthru
      _
    // Predicated region
    $region26: #{tpu_custom_call.1} parent=1 // pred_check
      _
    $region27: #{tpu_custom_call.1} parent=1 // pred_check_branch
      %96 = sbr.rel (0) target = $region29
    $region28: #{tpu_custom_call.1} parent=1 // pred_region
      %97 = dma.done [#allocation4], 128
    $region29: #{tpu_custom_call.1} parent=1 // pred_fallthru
      _
    %98 = vsyncpa [#allocation3], 1
    %99 = vsyncpa [#allocation6], 1
    %100 = vsyncpa [#allocation4], 1

</llo_original>
